<compile_context>
chip_gen: v5e
topology: v5e:2x2
jax: 0.10.0
libtpu: 0.0.40
codegen_flags: <defaults>
</compile_context>

<pallas_src>
import jax
import jax.numpy as jnp
from jax.experimental import pallas as pl
from jax.experimental.pallas import tpu as pltpu

# ---- small, deterministic synthetic shapes ----
N_MEM = 2        # number of memory models / prefix slots
B = 2            # batch
S = 8            # original token sequence length
D_MEM = 32       # memory-model hidden size (CLS embedding dim)
H_MLP = 64       # projection MLP hidden size
D_TGT = 32       # target-model hidden size (embedding dim)
VOCAB = 128      # target-model vocab size (multiple of 128 -> lane-dense logits)
PAD_TOKEN_ID = 0
T_TOTAL = N_MEM + S


# ---------------------------------------------------------------------------
# Fused kernel: MLP projection of CLS embeddings + wte gather + splice + LM head
# ---------------------------------------------------------------------------
def _fused_kernel(ids_ref, cls_ref, w1_ref, b1_ref, w2_ref, b2_ref,
                  wte_ref, wlm_ref, logits_ref, prefix_ref):
    # ---- 1) per-memory-model MLP projection (the hook's prefix embeddings) ----
    # N_MEM is tiny; a static (trace-time) unrolled loop keeps per-model weights
    # separate while everything stays VMEM-resident.
    for n in range(N_MEM):
        x = cls_ref[n]                                                  # (B, D_MEM)
        h = jnp.dot(x, w1_ref[n], preferred_element_type=jnp.float32) + b1_ref[n]
        # NOTE: torch nn.GELU defaults to the exact erf form; the tanh approx is
        # used here for guaranteed Mosaic lowering (the mlp architecture itself
        # is opaque in the spec — this 2-layer GELU MLP is a stand-in).
        h = jax.nn.gelu(h, approximate=True)
        y = jnp.dot(h, w2_ref[n], preferred_element_type=jnp.float32) + b2_ref[n]
        prefix_ref[n] = y.astype(prefix_ref.dtype)                      # (B, D_TGT)

    # ---- 2) fused wte gather + (identity decoder stub) + LM head, token rows only ----
    # The N_MEM pad-token prefix rows are never embedded: hook_wte_forward
    # replaces them with the projected CLS vectors above, and their LM-head
    # logits would be discarded by logits[:, N_MEM:] anyway.
    ids = ids_ref[...]                                                  # (B*S, 1) int32
    vocab_iota = jax.lax.broadcasted_iota(jnp.int32, (B * S, VOCAB), 1)
    onehot = (ids == vocab_iota).astype(jnp.float32)                    # (B*S, VOCAB)
    emb_tok = jnp.dot(onehot, wte_ref[...],
                      preferred_element_type=jnp.float32)               # (B*S, D_TGT)
    # TODO(synk): the real target transformer decoder would run here on the
    # spliced [prefix_ref ; emb_tok] sequence; it is stubbed as identity.
    logits_ref[...] = jnp.dot(
        emb_tok, wlm_ref[...], preferred_element_type=jnp.float32
    ).astype(logits_ref.dtype)                                          # (B*S, VOCAB)


def _fused_forward(ids_flat, cls_stack, w1, b1, w2, b2, wte, lm_head):
    """Single-invocation fused forward.  All operands are tiny -> whole arrays in VMEM."""
    vmem = pl.BlockSpec(memory_space=pltpu.MemorySpace.VMEM)
    return pl.pallas_call(
        _fused_kernel,
        out_shape=(
            jax.ShapeDtypeStruct((B * S, VOCAB), jnp.float32),    # token-row logits (lane-dense)
            jax.ShapeDtypeStruct((N_MEM, B, D_TGT), jnp.float32), # projected CLS (prefix rows)
        ),
        in_specs=[vmem] * 8,
        out_specs=(vmem, vmem),
    )(ids_flat, cls_stack, w1, b1, w2, b2, wte, lm_head)


# ---------------------------------------------------------------------------
# Forward glue mirroring MultiCrossModel.forward (is_cut_off_memory_model=False)
# ---------------------------------------------------------------------------
def multi_cross_model_forward(params, input_ids, attention_mask, memory_cls_embeddings):
    # add_multiple_memory_prefix: N_MEM prefix pad-ids + N_MEM attention ones.
    prefix_attn = jnp.ones((B, N_MEM), dtype=attention_mask.dtype)
    attn = jnp.concatenate([prefix_attn, attention_mask], axis=1)       # (B, T_TOTAL)
    del attn  # TODO(synk): consumed only by the (stubbed) target transformer body.
    # The prefix pad ids themselves are not materialized: their embeddings are
    # replaced by the hook and their logits are sliced off (see kernel comment).

    ids_flat = input_ids.reshape(B * S, 1).astype(jnp.int32)

    logits_flat, prefix_nbd = _fused_forward(
        ids_flat, memory_cls_embeddings,
        params["mlp_w1"], params["mlp_b1"], params["mlp_w2"], params["mlp_b2"],
        params["wte"], params["lm_head"])

    # output.logits = target_outputs.logits[:, num_memory_models:]
    logits = logits_flat.reshape(B, S, VOCAB)
    # torch.stack(cls_transformed_list, dim=1) -> (B, N_MEM, D_TGT); these are
    # the embeddings the hook splices in front of the decoder (returned for
    # inspection; the identity stub means they do not affect the logits).
    all_cls_transformed = jnp.transpose(prefix_nbd, (1, 0, 2))
    return logits, all_cls_transformed


def init_params(key):
    ks = jax.random.split(key, 6)
    scale = 0.02
    return {
        # per-memory-model MLP projections, stacked along leading N_MEM axis
        "mlp_w1": scale * jax.random.normal(ks[0], (N_MEM, D_MEM, H_MLP), jnp.float32),
        "mlp_b1": jnp.zeros((N_MEM, 1, H_MLP), jnp.float32),
        "mlp_w2": scale * jax.random.normal(ks[1], (N_MEM, H_MLP, D_TGT), jnp.float32),
        "mlp_b2": jnp.zeros((N_MEM, 1, D_TGT), jnp.float32),
        # target-model embedding table and LM head
        "wte": scale * jax.random.normal(ks[2], (VOCAB, D_TGT), jnp.float32),
        "lm_head": scale * jax.random.normal(ks[3], (D_TGT, VOCAB), jnp.float32),
    }


# ---------------------------------------------------------------------------
# Pure-JAX reference (same math, no Pallas) for a correctness check.
# ---------------------------------------------------------------------------
def reference_forward(params, input_ids, memory_cls):
    outs = []
    for n in range(N_MEM):
        h = memory_cls[n] @ params["mlp_w1"][n] + params["mlp_b1"][n]
        h = jax.nn.gelu(h, approximate=True)
        outs.append(h @ params["mlp_w2"][n] + params["mlp_b2"][n])
    all_cls = jnp.stack(outs, axis=1)                                   # (B, N_MEM, D_TGT)
    emb = jnp.take(params["wte"], input_ids, axis=0)                    # (B, S, D_TGT)
    logits = jnp.einsum("bsd,dv->bsv", emb, params["lm_head"])          # identity decoder stub
    return logits, all_cls


if __name__ == "__main__":
    key = jax.random.PRNGKey(0)
    kp, k_ids, k_cls = jax.random.split(key, 3)

    params = init_params(kp)
    input_ids = jax.random.randint(k_ids, (B, S), 1, VOCAB, dtype=jnp.int32)
    attention_mask = jnp.ones((B, S), dtype=jnp.int32)
    # stand-in for memory_models[i](...).hidden_states[-1][:, 0, :]
    memory_cls = jax.random.normal(k_cls, (N_MEM, B, D_MEM), jnp.float32)

    fwd = jax.jit(multi_cross_model_forward)
    logits, all_cls = fwd(params, input_ids, attention_mask, memory_cls)
    jax.block_until_ready((logits, all_cls))

    ref_logits, ref_cls = reference_forward(params, input_ids, memory_cls)

    assert logits.shape == (B, S, VOCAB), logits.shape
    assert all_cls.shape == (B, N_MEM, D_TGT), all_cls.shape
    assert bool(jnp.all(jnp.isfinite(logits)))
    assert bool(jnp.allclose(logits, ref_logits, atol=1e-3, rtol=1e-3)), \
        float(jnp.max(jnp.abs(logits - ref_logits)))
    assert bool(jnp.allclose(all_cls, ref_cls, atol=1e-3, rtol=1e-3)), \
        float(jnp.max(jnp.abs(all_cls - ref_cls)))
    print("KERNEL_OK")
</pallas_src>

<mosaic_0001>
module attributes {stable_mosaic.version = 11 : i64} {
  func.func @_fused_kernel(%arg0: memref<16x1xi32, #tpu.memory_space<vmem>>, %arg1: memref<2x2x32xf32, #tpu.memory_space<vmem>>, %arg2: memref<2x32x64xf32, #tpu.memory_space<vmem>>, %arg3: memref<2x1x64xf32, #tpu.memory_space<vmem>>, %arg4: memref<2x64x32xf32, #tpu.memory_space<vmem>>, %arg5: memref<2x1x32xf32, #tpu.memory_space<vmem>>, %arg6: memref<128x32xf32, #tpu.memory_space<vmem>>, %arg7: memref<32x128xf32, #tpu.memory_space<vmem>>, %arg8: memref<16x128xf32, #tpu.memory_space<vmem>>, %arg9: memref<2x2x32xf32, #tpu.memory_space<vmem>>) attributes {dimension_semantics = [], scalar_prefetch = 0 : i64, scratch_operands = 0 : i64, tpu.core_type = #tpu.core_type<tc>} {
    %c0 = arith.constant 0 : index
    %c0_0 = arith.constant 0 : index
    %c0_1 = arith.constant 0 : index
    %0 = vector.load %arg1[%c0, %c0_0, %c0_1] : memref<2x2x32xf32, #tpu.memory_space<vmem>>, vector<1x2x32xf32>
    %1 = vector.shape_cast %0 : vector<1x2x32xf32> to vector<2x32xf32>
    %c0_2 = arith.constant 0 : index
    %c0_3 = arith.constant 0 : index
    %c0_4 = arith.constant 0 : index
    %2 = vector.load %arg2[%c0_2, %c0_3, %c0_4] : memref<2x32x64xf32, #tpu.memory_space<vmem>>, vector<1x32x64xf32>
    %3 = vector.shape_cast %2 : vector<1x32x64xf32> to vector<32x64xf32>
    %cst = arith.constant dense<0.000000e+00> : vector<2x64xf32>
    %4 = tpu.matmul %1, %3, %cst {dimension_numbers = #tpu.dot_dimension_numbers<[1], [0], [0], [1], [0, 0, 1, 1], [], []>} : vector<2x32xf32>, vector<32x64xf32>, vector<2x64xf32> -> vector<2x64xf32>
    %c0_5 = arith.constant 0 : index
    %c0_6 = arith.constant 0 : index
    %c0_7 = arith.constant 0 : index
    %5 = vector.load %arg3[%c0_5, %c0_6, %c0_7] : memref<2x1x64xf32, #tpu.memory_space<vmem>>, vector<1x1x64xf32>
    %6 = vector.shape_cast %5 : vector<1x1x64xf32> to vector<1x64xf32>
    %7 = vector.broadcast %6 : vector<1x64xf32> to vector<2x64xf32>
    %8 = arith.addf %4, %7 : vector<2x64xf32>
    %9 = arith.mulf %8, %8 : vector<2x64xf32>
    %10 = arith.mulf %8, %9 : vector<2x64xf32>
    %cst_8 = arith.constant 4.471500e-02 : f32
    %11 = vector.broadcast %cst_8 : f32 to vector<2x64xf32>
    %12 = arith.mulf %11, %10 : vector<2x64xf32>
    %13 = arith.addf %8, %12 : vector<2x64xf32>
    %cst_9 = arith.constant 0.797884583 : f32
    %14 = vector.broadcast %cst_9 : f32 to vector<2x64xf32>
    %15 = arith.mulf %14, %13 : vector<2x64xf32>
    %16 = math.tanh %15 : vector<2x64xf32>
    %cst_10 = arith.constant 1.000000e+00 : f32
    %17 = vector.broadcast %cst_10 : f32 to vector<2x64xf32>
    %18 = arith.addf %17, %16 : vector<2x64xf32>
    %cst_11 = arith.constant 5.000000e-01 : f32
    %19 = vector.broadcast %cst_11 : f32 to vector<2x64xf32>
    %20 = arith.mulf %19, %18 : vector<2x64xf32>
    %21 = arith.mulf %8, %20 : vector<2x64xf32>
    %c0_12 = arith.constant 0 : index
    %c0_13 = arith.constant 0 : index
    %c0_14 = arith.constant 0 : index
    %22 = vector.load %arg4[%c0_12, %c0_13, %c0_14] : memref<2x64x32xf32, #tpu.memory_space<vmem>>, vector<1x64x32xf32>
    %23 = vector.shape_cast %22 : vector<1x64x32xf32> to vector<64x32xf32>
    %cst_15 = arith.constant dense<0.000000e+00> : vector<2x32xf32>
    %24 = tpu.matmul %21, %23, %cst_15 {dimension_numbers = #tpu.dot_dimension_numbers<[1], [0], [0], [1], [0, 0, 1, 1], [], []>} : vector<2x64xf32>, vector<64x32xf32>, vector<2x32xf32> -> vector<2x32xf32>
    %c0_16 = arith.constant 0 : index
    %c0_17 = arith.constant 0 : index
    %c0_18 = arith.constant 0 : index
    %25 = vector.load %arg5[%c0_16, %c0_17, %c0_18] : memref<2x1x32xf32, #tpu.memory_space<vmem>>, vector<1x1x32xf32>
    %26 = vector.shape_cast %25 : vector<1x1x32xf32> to vector<1x32xf32>
    %27 = vector.broadcast %26 : vector<1x32xf32> to vector<2x32xf32>
    %28 = arith.addf %24, %27 : vector<2x32xf32>
    %c0_19 = arith.constant 0 : index
    %c0_20 = arith.constant 0 : index
    %c0_21 = arith.constant 0 : index
    %29 = vector.load %arg9[%c0_19, %c0_20, %c0_21] : memref<2x2x32xf32, #tpu.memory_space<vmem>>, vector<1x2x32xf32>
    %30 = vector.shape_cast %29 : vector<1x2x32xf32> to vector<2x32xf32>
    %31 = vector.shape_cast %28 : vector<2x32xf32> to vector<1x2x32xf32>
    tpu.vector_store %arg9[%c0_19, %c0_20, %c0_21], %31 {strides = array<i32>} : memref<2x2x32xf32, #tpu.memory_space<vmem>>, vector<1x2x32xf32>,
    %c1 = arith.constant 1 : index
    %c0_22 = arith.constant 0 : index
    %c0_23 = arith.constant 0 : index
    %32 = vector.load %arg1[%c1, %c0_22, %c0_23] : memref<2x2x32xf32, #tpu.memory_space<vmem>>, vector<1x2x32xf32>
    %33 = vector.shape_cast %32 : vector<1x2x32xf32> to vector<2x32xf32>
    %c1_24 = arith.constant 1 : index
    %c0_25 = arith.constant 0 : index
    %c0_26 = arith.constant 0 : index
    %34 = vector.load %arg2[%c1_24, %c0_25, %c0_26] : memref<2x32x64xf32, #tpu.memory_space<vmem>>, vector<1x32x64xf32>
    %35 = vector.shape_cast %34 : vector<1x32x64xf32> to vector<32x64xf32>
    %cst_27 = arith.constant dense<0.000000e+00> : vector<2x64xf32>
    %36 = tpu.matmul %33, %35, %cst_27 {dimension_numbers = #tpu.dot_dimension_numbers<[1], [0], [0], [1], [0, 0, 1, 1], [], []>} : vector<2x32xf32>, vector<32x64xf32>, vector<2x64xf32> -> vector<2x64xf32>
    %c1_28 = arith.constant 1 : index
    %c0_29 = arith.constant 0 : index
    %c0_30 = arith.constant 0 : index
    %37 = vector.load %arg3[%c1_28, %c0_29, %c0_30] : memref<2x1x64xf32, #tpu.memory_space<vmem>>, vector<1x1x64xf32>
    %38 = vector.shape_cast %37 : vector<1x1x64xf32> to vector<1x64xf32>
    %39 = vector.broadcast %38 : vector<1x64xf32> to vector<2x64xf32>
    %40 = arith.addf %36, %39 : vector<2x64xf32>
    %41 = arith.mulf %40, %40 : vector<2x64xf32>
    %42 = arith.mulf %40, %41 : vector<2x64xf32>
    %cst_31 = arith.constant 4.471500e-02 : f32
    %43 = vector.broadcast %cst_31 : f32 to vector<2x64xf32>
    %44 = arith.mulf %43, %42 : vector<2x64xf32>
    %45 = arith.addf %40, %44 : vector<2x64xf32>
    %cst_32 = arith.constant 0.797884583 : f32
    %46 = vector.broadcast %cst_32 : f32 to vector<2x64xf32>
    %47 = arith.mulf %46, %45 : vector<2x64xf32>
    %48 = math.tanh %47 : vector<2x64xf32>
    %cst_33 = arith.constant 1.000000e+00 : f32
    %49 = vector.broadcast %cst_33 : f32 to vector<2x64xf32>
    %50 = arith.addf %49, %48 : vector<2x64xf32>
    %cst_34 = arith.constant 5.000000e-01 : f32
    %51 = vector.broadcast %cst_34 : f32 to vector<2x64xf32>
    %52 = arith.mulf %51, %50 : vector<2x64xf32>
    %53 = arith.mulf %40, %52 : vector<2x64xf32>
    %c1_35 = arith.constant 1 : index
    %c0_36 = arith.constant 0 : index
    %c0_37 = arith.constant 0 : index
    %54 = vector.load %arg4[%c1_35, %c0_36, %c0_37] : memref<2x64x32xf32, #tpu.memory_space<vmem>>, vector<1x64x32xf32>
    %55 = vector.shape_cast %54 : vector<1x64x32xf32> to vector<64x32xf32>
    %cst_38 = arith.constant dense<0.000000e+00> : vector<2x32xf32>
    %56 = tpu.matmul %53, %55, %cst_38 {dimension_numbers = #tpu.dot_dimension_numbers<[1], [0], [0], [1], [0, 0, 1, 1], [], []>} : vector<2x64xf32>, vector<64x32xf32>, vector<2x32xf32> -> vector<2x32xf32>
    %c1_39 = arith.constant 1 : index
    %c0_40 = arith.constant 0 : index
    %c0_41 = arith.constant 0 : index
    %57 = vector.load %arg5[%c1_39, %c0_40, %c0_41] : memref<2x1x32xf32, #tpu.memory_space<vmem>>, vector<1x1x32xf32>
    %58 = vector.shape_cast %57 : vector<1x1x32xf32> to vector<1x32xf32>
    %59 = vector.broadcast %58 : vector<1x32xf32> to vector<2x32xf32>
    %60 = arith.addf %56, %59 : vector<2x32xf32>
    %c1_42 = arith.constant 1 : index
    %c0_43 = arith.constant 0 : index
    %c0_44 = arith.constant 0 : index
    %61 = vector.load %arg9[%c1_42, %c0_43, %c0_44] : memref<2x2x32xf32, #tpu.memory_space<vmem>>, vector<1x2x32xf32>
    %62 = vector.shape_cast %61 : vector<1x2x32xf32> to vector<2x32xf32>
    %63 = vector.shape_cast %60 : vector<2x32xf32> to vector<1x2x32xf32>
    tpu.vector_store %arg9[%c1_42, %c0_43, %c0_44], %63 {strides = array<i32>} : memref<2x2x32xf32, #tpu.memory_space<vmem>>, vector<1x2x32xf32>,
    %c0_45 = arith.constant 0 : index
    %c0_46 = arith.constant 0 : index
    %64 = vector.load %arg0[%c0_45, %c0_46] : memref<16x1xi32, #tpu.memory_space<vmem>>, vector<16x1xi32>
    %65 = tpu.iota {dimensions = array<i32: 1>} : vector<16x128xi32>
    %66 = vector.broadcast %64 : vector<16x1xi32> to vector<16x128xi32>
    %67 = arith.cmpi eq, %66, %65 : vector<16x128xi32>
    %68 = arith.extui %67 : vector<16x128xi1> to vector<16x128xi32>
    %69 = arith.sitofp %68 : vector<16x128xi32> to vector<16x128xf32>
    %c0_47 = arith.constant 0 : index
    %c0_48 = arith.constant 0 : index
    %70 = vector.load %arg6[%c0_47, %c0_48] : memref<128x32xf32, #tpu.memory_space<vmem>>, vector<128x32xf32>
    %cst_49 = arith.constant dense<0.000000e+00> : vector<16x32xf32>
    %71 = tpu.matmul %69, %70, %cst_49 {dimension_numbers = #tpu.dot_dimension_numbers<[1], [0], [0], [1], [0, 0, 1, 1], [], []>} : vector<16x128xf32>, vector<128x32xf32>, vector<16x32xf32> -> vector<16x32xf32>
    %c0_50 = arith.constant 0 : index
    %c0_51 = arith.constant 0 : index
    %72 = vector.load %arg7[%c0_50, %c0_51] : memref<32x128xf32, #tpu.memory_space<vmem>>, vector<32x128xf32>
    %cst_52 = arith.constant dense<0.000000e+00> : vector<16x128xf32>
    %73 = tpu.matmul %71, %72, %cst_52 {dimension_numbers = #tpu.dot_dimension_numbers<[1], [0], [0], [1], [0, 0, 1, 1], [], []>} : vector<16x32xf32>, vector<32x128xf32>, vector<16x128xf32> -> vector<16x128xf32>
    %c0_53 = arith.constant 0 : index
    %c0_54 = arith.constant 0 : index
    %74 = vector.load %arg8[%c0_53, %c0_54] : memref<16x128xf32, #tpu.memory_space<vmem>>, vector<16x128xf32>
    tpu.vector_store %arg8[%c0_53, %c0_54], %73 {strides = array<i32>} : memref<16x128xf32, #tpu.memory_space<vmem>>, vector<16x128xf32>,
    return
  }
}

</mosaic_0001>

<llo_original>
// kernel: multi_cross_model_forward.1
$region0: #{multi_cross_model_forward.1}
  #allocation0 [shape = 'u32[]', space=smem, size = 0x4, offset = 0x4, fixed_abs, tag = 'smem constant byte address 0x4 - core index']
  #allocation1 [shape = 'u32[72,128]{1,0:T(1,128)}', space=vmem, size = 0x9000, scoped, tag = 'internal scratch']
  %s0 = inlined_call_operand.vmem [shape: s32[16,1], index: 0, kind: input, shape index: {}]
  %s1 = inlined_call_operand.vmem [shape: f32[2,2,32], index: 1, kind: input, shape index: {}]
  %s2 = inlined_call_operand.vmem [shape: f32[2,32,64], index: 2, kind: input, shape index: {}]
  %s3 = inlined_call_operand.vmem [shape: f32[2,1,64], index: 3, kind: input, shape index: {}]
  %s4 = inlined_call_operand.vmem [shape: f32[2,64,32], index: 4, kind: input, shape index: {}]
  %s5 = inlined_call_operand.vmem [shape: f32[2,1,32], index: 5, kind: input, shape index: {}]
  %s6 = inlined_call_operand.vmem [shape: f32[128,32], index: 6, kind: input, shape index: {}]
  %s7 = inlined_call_operand.vmem [shape: f32[32,128], index: 7, kind: input, shape index: {}]
  %s8 = inlined_call_operand.hbm [shape: f32[16,128], index: 8, kind: output, shape index: {0}]
  %s9 = inlined_call_operand.vmem [shape: f32[2,2,32], index: 9, kind: output, shape index: {1}]
  %10 = xla_tuple %s8, %s9
  %s11 = sld [smem:[#allocation0]]
  $region50: #{multi_cross_model_forward.1} parent=0
    _
  %s13 = ssub.s32 1, %s11
  %s14 = scalar_select 0, %s13, %s11
  $region1: #{multi_cross_model_forward.1} parent=0
    #allocation2 [shape = 'u8[8192]{0}', space=vmem, size = 0x2000, scoped, tag = 'output window, operand 0, single buffered']
    #allocation3 [shape = 's32[1]{0}', space=sflag, size = 0x4, scoped, tag = 'scoped memory for multi_cross_model_forward.1']
    %15 = vsyncpa [#allocation3], 0
    // Predicated region
    $region2: #{multi_cross_model_forward.1} parent=1 // pred_check
      _
    $region3: #{multi_cross_model_forward.1} parent=1 // pred_check_branch
      %17 = sbr.rel (0) target = $region5
    $region4: #{multi_cross_model_forward.1} parent=1 // pred_region
      _
    $region5: #{multi_cross_model_forward.1} parent=1 // pred_fallthru
      _
    // Predicated region
    $region6: #{multi_cross_model_forward.1} parent=1 // pred_check
      _
    $region7: #{multi_cross_model_forward.1} parent=1 // pred_check_branch
      %19 = sbr.rel (0) target = $region9
    $region8: #{multi_cross_model_forward.1} parent=1 // pred_region
      _
    $region9: #{multi_cross_model_forward.1} parent=1 // pred_fallthru
      _
    // Predicated region
    $region10: #{multi_cross_model_forward.1} parent=1 // pred_check
      _
    $region11: #{multi_cross_model_forward.1} parent=1 // pred_check_branch
      %21 = sbr.rel (0) target = $region13
    $region12: #{multi_cross_model_forward.1} parent=1 // pred_region
      _
    $region13: #{multi_cross_model_forward.1} parent=1 // pred_fallthru
      _
    // Predicated region
    $region14: #{multi_cross_model_forward.1} parent=1 // pred_check
      _
    $region15: #{multi_cross_model_forward.1} parent=1 // pred_check_branch
      %23 = sbr.rel (0) target = $region17
    $region16: #{multi_cross_model_forward.1} parent=1 // pred_region
      _
    $region17: #{multi_cross_model_forward.1} parent=1 // pred_fallthru
      _
    // Predicated region
    $region18: #{multi_cross_model_forward.1} parent=1 // pred_check
      _
    $region19: #{multi_cross_model_forward.1} parent=1 // pred_check_branch
      %25 = sbr.rel (0) target = $region21
    $region20: #{multi_cross_model_forward.1} parent=1 // pred_region
      _
    $region21: #{multi_cross_model_forward.1} parent=1 // pred_fallthru
      _
    // Predicated region
    $region22: #{multi_cross_model_forward.1} parent=1 // pred_check
      _
    $region23: #{multi_cross_model_forward.1} parent=1 // pred_check_branch
      %27 = sbr.rel (0) target = $region25
    $region24: #{multi_cross_model_forward.1} parent=1 // pred_region
      _
    $region25: #{multi_cross_model_forward.1} parent=1 // pred_fallthru
      _
    // Predicated region
    $region26: #{multi_cross_model_forward.1} parent=1 // pred_check
      _
    $region27: #{multi_cross_model_forward.1} parent=1 // pred_check_branch
      %29 = sbr.rel (0) target = $region29
    $region28: #{multi_cross_model_forward.1} parent=1 // pred_region
      _
    $region29: #{multi_cross_model_forward.1} parent=1 // pred_fallthru
      _
    // Predicated region
    $region30: #{multi_cross_model_forward.1} parent=1 // pred_check
      _
    $region31: #{multi_cross_model_forward.1} parent=1 // pred_check_branch
      %31 = sbr.rel (0) target = $region33
    $region32: #{multi_cross_model_forward.1} parent=1 // pred_region
      _
    $region33: #{multi_cross_model_forward.1} parent=1 // pred_fallthru
      _
    %v32 = vld [vmem:[%s1] sm:$0x3]
    %v33 = vld [vmem:[%s2] sm:$0xff]
    %v34 = vld [vmem:[%s2 + $0x8] sm:$0xff]
    %v35 = vld [vmem:[%s2 + $0x10] sm:$0xff]
    %v36 = vld [vmem:[%s2 + $0x18] sm:$0xff]
    %v37 = vld [vmem:[%s3] sm:$0x1]
    %v39 = vperm.slane %v37, 0
    %vm41 = vcmask 261120
    %v43 = vsel %vm41, %v32, 0
    %45 = vmatpush.msra.mxu0 0.0
    %46 = vmatpush.msra.mxu0 0.0
    %47 = vmatpush.msra.mxu0 0.0
    %48 = vmatpush.msra.mxu0 0.0
    %49 = vmatpush.msra.mxu0 0.0
    %50 = vmatpush.msra.mxu0 0.0
    %51 = vmatpush.msra.mxu0 0.0
    %52 = vmatpush.msra.mxu0 0.0
    %53 = vmatpush.msra.mxu0 0.0
    %54 = vmatpush.msra.mxu0 0.0
    %55 = vmatpush.msra.mxu0 0.0
    %56 = vmatpush.msra.mxu0 0.0
    %57 = vmatpush.msra.mxu0 %v36
    %58 = vmatpush.msra.mxu0 %v35
    %59 = vmatpush.msra.mxu0 %v34
    %60 = vmatpush.msra.mxu0 %v33
    %61 = vmatmul.f32.gmra.mxu0 %v43
    %v62 = vpop.f32.mrf.mxu0
    %v63 = vadd.f32 %v39, %v62
    %64 = vdwg.mxu0
    %v65 = vmul.f32 %v63, %v63
    %v66 = vmul.f32 %v63, %v65
    %v67 = vmul.f32 %v66, 0.044715
    %v68 = vadd.f32 %v63, %v67
    %v69 = vmul.f32 %v68, 0.7978846
    %v70 = vtanh.pop %v69
    %v71 = vadd.f32 %v70, 1.0
    %v72 = vmul.f32 %v71, 0.5
    %v73 = vmul.f32 %v63, %v72
    %v74 = vld [vmem:[%s4] sm:$0xff]
    %v75 = vld [vmem:[%s4 + $0x8] sm:$0xff]
    %v76 = vld [vmem:[%s4 + $0x10] sm:$0xff]
    %v77 = vld [vmem:[%s4 + $0x18] sm:$0xff]
    %v78 = vld [vmem:[%s4 + $0x20] sm:$0xff]
    %v79 = vld [vmem:[%s4 + $0x28] sm:$0xff]
    %v80 = vld [vmem:[%s4 + $0x30] sm:$0xff]
    %v81 = vld [vmem:[%s4 + $0x38] sm:$0xff]
    %v82 = vld [vmem:[%s5] sm:$0x1]
    %v84 = vperm.slane %v82, 0
    %vm86 = vcmask 523264
    %v88 = vsel %vm86, %v73, 0
    %90 = vmatpush.msra.mxu0 0.0
    %91 = vmatpush.msra.mxu0 0.0
    %92 = vmatpush.msra.mxu0 0.0
    %93 = vmatpush.msra.mxu0 0.0
    %94 = vmatpush.msra.mxu0 0.0
    %95 = vmatpush.msra.mxu0 0.0
    %96 = vmatpush.msra.mxu0 0.0
    %97 = vmatpush.msra.mxu0 0.0
    %98 = vmatpush.msra.mxu0 %v81
    %99 = vmatpush.msra.mxu0 %v80
    %100 = vmatpush.msra.mxu0 %v79
    %101 = vmatpush.msra.mxu0 %v78
    %102 = vmatpush.msra.mxu0 %v77
    %103 = vmatpush.msra.mxu0 %v76
    %104 = vmatpush.msra.mxu0 %v75
    %105 = vmatpush.msra.mxu0 %v74
    %106 = vmatmul.f32.gmra.mxu0 %v88
    %v107 = vpop.f32.mrf.mxu0
    %v108 = vadd.f32 %v84, %v107
    %109 = vdwg.mxu0
    %vm110 = vcmask 254976
    %111 = vst.msk [vmem:[%s9] sm:$0x3] %vm110, %v108
    %s112 = scalar_lea.vmem %s1, 2
    %v113 = vld [vmem:[%s112] sm:$0x3]
    %s114 = scalar_lea.vmem %s2, 32
    %v115 = vld [vmem:[%s114] sm:$0xff]
    %v116 = vld [vmem:[%s114 + $0x8] sm:$0xff]
    %v117 = vld [vmem:[%s114 + $0x10] sm:$0xff]
    %v118 = vld [vmem:[%s114 + $0x18] sm:$0xff]
    %s119 = scalar_lea.vmem %s3, 1
    %v120 = vld [vmem:[%s119] sm:$0x1]
    %v122 = vperm.slane %v120, 0
    %v125 = vsel %vm41, %v113, 0
    %127 = vmatpush.msra.mxu0 0.0
    %128 = vmatpush.msra.mxu0 0.0
    %129 = vmatpush.msra.mxu0 0.0
    %130 = vmatpush.msra.mxu0 0.0
    %131 = vmatpush.msra.mxu0 0.0
    %132 = vmatpush.msra.mxu0 0.0
    %133 = vmatpush.msra.mxu0 0.0
    %134 = vmatpush.msra.mxu0 0.0
    %135 = vmatpush.msra.mxu0 0.0
    %136 = vmatpush.msra.mxu0 0.0
    %137 = vmatpush.msra.mxu0 0.0
    %138 = vmatpush.msra.mxu0 0.0
    %139 = vmatpush.msra.mxu0 %v118
    %140 = vmatpush.msra.mxu0 %v117
    %141 = vmatpush.msra.mxu0 %v116
    %142 = vmatpush.msra.mxu0 %v115
    %143 = vmatmul.f32.gmra.mxu0 %v125
    %v144 = vpop.f32.mrf.mxu0
    %v145 = vadd.f32 %v122, %v144
    %146 = vdwg.mxu0
    %v147 = vmul.f32 %v145, %v145
    %v148 = vmul.f32 %v145, %v147
    %v149 = vmul.f32 %v148, 0.044715
    %v150 = vadd.f32 %v145, %v149
    %v151 = vmul.f32 %v150, 0.7978846
    %v152 = vtanh.pop %v151
    %v153 = vadd.f32 %v152, 1.0
    %v154 = vmul.f32 %v153, 0.5
    %v155 = vmul.f32 %v145, %v154
    %s156 = scalar_lea.vmem %s4, 64
    %v157 = vld [vmem:[%s156] sm:$0xff]
    %v158 = vld [vmem:[%s156 + $0x8] sm:$0xff]
    %v159 = vld [vmem:[%s156 + $0x10] sm:$0xff]
    %v160 = vld [vmem:[%s156 + $0x18] sm:$0xff]
    %v161 = vld [vmem:[%s156 + $0x20] sm:$0xff]
    %v162 = vld [vmem:[%s156 + $0x28] sm:$0xff]
    %v163 = vld [vmem:[%s156 + $0x30] sm:$0xff]
    %v164 = vld [vmem:[%s156 + $0x38] sm:$0xff]
    %s165 = scalar_lea.vmem %s5, 1
    %v166 = vld [vmem:[%s165] sm:$0x1]
    %v168 = vperm.slane %v166, 0
    %v171 = vsel %vm86, %v155, 0
    %173 = vmatpush.msra.mxu0 0.0
    %174 = vmatpush.msra.mxu0 0.0
    %175 = vmatpush.msra.mxu0 0.0
    %176 = vmatpush.msra.mxu0 0.0
    %177 = vmatpush.msra.mxu0 0.0
    %178 = vmatpush.msra.mxu0 0.0
    %179 = vmatpush.msra.mxu0 0.0
    %180 = vmatpush.msra.mxu0 0.0
    %181 = vmatpush.msra.mxu0 %v164
    %182 = vmatpush.msra.mxu0 %v163
    %183 = vmatpush.msra.mxu0 %v162
    %184 = vmatpush.msra.mxu0 %v161
    %185 = vmatpush.msra.mxu0 %v160
    %186 = vmatpush.msra.mxu0 %v159
    %187 = vmatpush.msra.mxu0 %v158
    %188 = vmatpush.msra.mxu0 %v157
    %189 = vmatmul.f32.gmra.mxu0 %v171
    %v190 = vpop.f32.mrf.mxu0
    %v191 = vadd.f32 %v168, %v190
    %192 = vdwg.mxu0
    %s193 = scalar_lea.vmem %s9, 2
    %194 = vst.msk [vmem:[%s193] sm:$0x3] %vm110, %v191
    %v195 = vld [vmem:[%s0] sm:$0xff]
    %v196 = vld [vmem:[%s0 + $0x8] sm:$0xff]
    %v197 = vlaneseq
    %v198 = vand.u32 %v197, 127
    %199 = vset.pattern.permute.xlu0 0
    %200 = vperm.xlu0 %199, %v195
    %v201 = vpop.permute.xlu0 %200
    %202 = vset.pattern.permute.xlu0 0
    %203 = vperm.xlu0 %202, %v196
    %v204 = vpop.permute.xlu0 %203
    %vm205 = vcmp.eq.s32.totalorder %v201, %v198
    %vm206 = vcmp.eq.s32.totalorder %v204, %v198
    %v207 = vsel %vm205, 1, 0
    %v208 = vsel %vm206, 1, 0
    %v209 = vcvt.s32.f32 %v207
    %v210 = vcvt.s32.f32 %v208
    %v211 = vld [vmem:[%s6] sm:$0xff]
    %v212 = vld [vmem:[%s6 + $0x8] sm:$0xff]
    %v213 = vld [vmem:[%s6 + $0x10] sm:$0xff]
    %v214 = vld [vmem:[%s6 + $0x18] sm:$0xff]
    %v215 = vld [vmem:[%s6 + $0x20] sm:$0xff]
    %v216 = vld [vmem:[%s6 + $0x28] sm:$0xff]
    %v217 = vld [vmem:[%s6 + $0x30] sm:$0xff]
    %v218 = vld [vmem:[%s6 + $0x38] sm:$0xff]
    %v219 = vld [vmem:[%s6 + $0x40] sm:$0xff]
    %v220 = vld [vmem:[%s6 + $0x48] sm:$0xff]
    %v221 = vld [vmem:[%s6 + $0x50] sm:$0xff]
    %v222 = vld [vmem:[%s6 + $0x58] sm:$0xff]
    %v223 = vld [vmem:[%s6 + $0x60] sm:$0xff]
    %v224 = vld [vmem:[%s6 + $0x68] sm:$0xff]
    %v225 = vld [vmem:[%s6 + $0x70] sm:$0xff]
    %v226 = vld [vmem:[%s6 + $0x78] sm:$0xff]
    %227 = vmatpush.msra.mxu0 %v226
    %228 = vmatpush.msra.mxu0 %v225
    %229 = vmatpush.msra.mxu0 %v224
    %230 = vmatpush.msra.mxu0 %v223
    %231 = vmatpush.msra.mxu0 %v222
    %232 = vmatpush.msra.mxu0 %v221
    %233 = vmatpush.msra.mxu0 %v220
    %234 = vmatpush.msra.mxu0 %v219
    %235 = vmatpush.msra.mxu0 %v218
    %236 = vmatpush.msra.mxu0 %v217
    %237 = vmatpush.msra.mxu0 %v216
    %238 = vmatpush.msra.mxu0 %v215
    %239 = vmatpush.msra.mxu0 %v214
    %240 = vmatpush.msra.mxu0 %v213
    %241 = vmatpush.msra.mxu0 %v212
    %242 = vmatpush.msra.mxu0 %v211
    %243 = vmatmul.f32.gmra.mxu0 %v209
    %v244 = vpop.f32.mrf.mxu0
    %v245 = vadd.f32 0.0, %v244
    %246 = vmatmul.f32.gmra.mxu0 %v210
    %v247 = vpop.f32.mrf.mxu0
    %v248 = vadd.f32 0.0, %v247
    %249 = vdwg.mxu0
    %v250 = vld [vmem:[%s7] sm:$0xff]
    %v251 = vld [vmem:[%s7 + $0x8] sm:$0xff]
    %v252 = vld [vmem:[%s7 + $0x10] sm:$0xff]
    %v253 = vld [vmem:[%s7 + $0x18] sm:$0xff]
    %v255 = vsel %vm41, %v245, 0
    %v258 = vsel %vm41, %v248, 0
    %260 = vmatpush.msra.mxu0 0.0
    %261 = vmatpush.msra.mxu0 0.0
    %262 = vmatpush.msra.mxu0 0.0
    %263 = vmatpush.msra.mxu0 0.0
    %264 = vmatpush.msra.mxu0 0.0
    %265 = vmatpush.msra.mxu0 0.0
    %266 = vmatpush.msra.mxu0 0.0
    %267 = vmatpush.msra.mxu0 0.0
    %268 = vmatpush.msra.mxu0 0.0
    %269 = vmatpush.msra.mxu0 0.0
    %270 = vmatpush.msra.mxu0 0.0
    %271 = vmatpush.msra.mxu0 0.0
    %272 = vmatpush.msra.mxu0 %v253
    %273 = vmatpush.msra.mxu0 %v252
    %274 = vmatpush.msra.mxu0 %v251
    %275 = vmatpush.msra.mxu0 %v250
    %276 = vmatmul.f32.gmra.mxu0 %v255
    %v277 = vpop.f32.mrf.mxu0
    %v278 = vadd.f32 0.0, %v277
    %279 = vmatmul.f32.gmra.mxu0 %v258
    %v280 = vpop.f32.mrf.mxu0
    %v281 = vadd.f32 0.0, %v280
    %282 = vdwg.mxu0
    %283 = vst [vmem:[#allocation2] sm:$0xff] %v278
    %284 = vst [vmem:[#allocation2 + $0x8] sm:$0xff] %v281
    // Predicated region
    $region34: #{multi_cross_model_forward.1} parent=1 // pred_check
      _
    $region35: #{multi_cross_model_forward.1} parent=1 // pred_check_branch
      %286 = sbr.rel (0) target = $region37
    $region36: #{multi_cross_model_forward.1} parent=1 // pred_region
      %288 = vsyncadd [#allocation3], 0
      %s289 = sshll.u32 [#allocation2], 4
      %s290 = int_to_ptr.vmem [resolvable:$true] %s289
      %s291 = sshll.u32 %s8, 4
      %s292 = int_to_ptr.hbm [resolvable:$true] %s291
      %297 = dma.vmem_to_hbm [thread:$0]  %s290, 256, %s292, [#allocation3], 128, 128, 8
    $region37: #{multi_cross_model_forward.1} parent=1 // pred_fallthru
      _
    // Predicated region
    $region38: #{multi_cross_model_forward.1} parent=1 // pred_check
      _
    $region39: #{multi_cross_model_forward.1} parent=1 // pred_check_branch
      %299 = sbr.rel (0) target = $region41
    $region40: #{multi_cross_model_forward.1} parent=1 // pred_region
      _
    $region41: #{multi_cross_model_forward.1} parent=1 // pred_fallthru
      _
    // Predicated region
    $region42: #{multi_cross_model_forward.1} parent=1 // pred_check
      _
    $region43: #{multi_cross_model_forward.1} parent=1 // pred_check_branch
      %301 = sbr.rel (0) target = $region45
    $region44: #{multi_cross_model_forward.1} parent=1 // pred_region
      %303 = dma.done [#allocation3], 256
    $region45: #{multi_cross_model_forward.1} parent=1 // pred_fallthru
      _
    // Predicated region
    $region46: #{multi_cross_model_forward.1} parent=1 // pred_check
      _
    $region47: #{multi_cross_model_forward.1} parent=1 // pred_check_branch
      %305 = sbr.rel (0) target = $region49
    $region48: #{multi_cross_model_forward.1} parent=1 // pred_region
      _
    $region49: #{multi_cross_model_forward.1} parent=1 // pred_fallthru
      _
    %306 = vsyncpa [#allocation3], 1

</llo_original>
